<compile_context>
chip_gen: v5e
topology: v5e:2x2
jax: 0.10.0
libtpu: 0.0.40
codegen_flags: <defaults>
</compile_context>

<pallas_src>
import jax
import jax.numpy as jnp
from jax.experimental import pallas as pl
from jax.experimental.pallas import tpu as pltpu

_LANES = 128          # lane-dense MXU operand width for the packed weights
_NUM_CLASSES = 2      # nn.Linear(2H, 2)


def _proj_kernel(left_ref, right_ref, wl_ref, wr_ref, b_ref, out_ref):
    # logits = left @ Wl^T + right @ Wr^T + b.  The concat (B, 2H) is never
    # materialized; the MXU operands are lane-dense (N = 128) and only the two
    # real logit lanes are stored (masked vst is fine: the kernel is HBM-bound
    # on the activation reads, not on the store slot).
    acc = jnp.dot(left_ref[...], wl_ref[...], preferred_element_type=jnp.float32)
    acc = acc + jnp.dot(right_ref[...], wr_ref[...],
                        preferred_element_type=jnp.float32)
    out_ref[...] = (acc + b_ref[...])[:, :_NUM_CLASSES].astype(out_ref.dtype)


def prepack_proj_params(w, b, dtype=jnp.bfloat16):
    """One-time (init-time) prep of nn.Linear(2H, 2) params for the kernel.

    Splits W (2, 2H) into left/right halves, transposes to (H, 2), and pads the
    output dim up to 128 lanes so the MXU operand is lane-dense.  Weights are
    cast to `dtype` (bf16 by default -> ~1e-3 logit error vs f32 Linear).
    """
    out_dim, two_h = w.shape
    assert out_dim == _NUM_CLASSES and two_h % 2 == 0
    H = two_h // 2
    wl_pad = jnp.zeros((H, _LANES), dtype).at[:, :out_dim].set(
        w[:, :H].T.astype(dtype))
    wr_pad = jnp.zeros((H, _LANES), dtype).at[:, :out_dim].set(
        w[:, H:].T.astype(dtype))
    b_pad = jnp.zeros((1, _LANES), jnp.float32).at[:, :out_dim].set(
        b.astype(jnp.float32)[None, :])
    return wl_pad, wr_pad, b_pad


def _round_up(x, m):
    return ((x + m - 1) // m) * m


def _pick_batch_tile(B, H, act_itemsize):
    """Batch tile: no divisibility requirement (partial last block is fine).

    The double-buffered activation blocks (2 inputs x 2 buffers x TB x H x
    itemsize) dominate VMEM; they are budgeted at ~24 MiB so the whole kernel
    stays well under the 48 MiB vmem_limit requested below (headroom under
    v7x's 64 MiB physical VMEM; v5e/v6e have 128 MiB physical).  At H=1024/bf16
    this gives TB=2048 (~1.3 us of DMA per step on v7x, so the ~0.35 us fixed
    pipeline overhead is amortized).  TB is also capped at round_up(ceil(B/2),8)
    so the grid has >=2 steps whenever possible and v7x's two TensorCores both
    get work on the "parallel" batch axis.
    """
    act_budget = 24 * 1024 * 1024
    cap = (act_budget // (4 * H * act_itemsize)) // 8 * 8
    cap = max(8, min(cap, 2048))
    half = -(-B // 2)                       # ceil(B / 2)
    return min(cap, max(8, _round_up(half, 8)))


def paraphrase_logits(left, right, wl_pad, wr_pad, b_pad):
    """ParaphraseDetectionTask projection.

    Args:
      left:   (B, H) pooler output of sentence 1 (bf16 preferred).
      right:  (B, H) pooler output of sentence 2 (bf16 preferred).
      wl_pad: (H, 128) packed left half of the Linear weight (from prepack).
      wr_pad: (H, 128) packed right half of the Linear weight (from prepack).
      b_pad:  (1, 128) packed bias (from prepack).
    Returns:
      (B, 2) float32 logits == cat([left, right], 1) @ W.T + b
    """
    B, H = left.shape
    assert right.shape == (B, H)
    assert wl_pad.shape == (H, _LANES) and wr_pad.shape == (H, _LANES)
    assert b_pad.shape == (1, _LANES)

    act_itemsize = left.dtype.itemsize
    w_itemsize = wl_pad.dtype.itemsize
    TB = _pick_batch_tile(B, H, act_itemsize)
    grid = (pl.cdiv(B, TB),)

    # VMEM actually used: double-buffered activations, single-buffered weights/
    # bias (Buffered(1)), double-buffered tiny output block.  Request at least
    # the 32 MiB default and at most 48 MiB (headroom under v7x's 64 MiB).
    vmem_need = (2 * 2 * TB * H * act_itemsize
                 + 2 * H * _LANES * w_itemsize
                 + _LANES * 4
                 + 2 * TB * _NUM_CLASSES * 4)
    vmem_limit = int(min(48 * 1024 * 1024,
                         max(32 * 1024 * 1024, vmem_need + 4 * 1024 * 1024)))

    # Advisory cost: tiny, memory-bound op -> let XLA overlap it with the two
    # surrounding BertModel calls.
    cost = pl.CostEstimate(
        flops=8 * B * H,                    # two (B,H)x(H,2) matmuls
        transcendentals=0,
        bytes_accessed=(2 * B * H * act_itemsize        # activations in
                        + B * _NUM_CLASSES * 4          # logits out
                        + 2 * H * _LANES * w_itemsize   # weights (once)
                        + _LANES * 4),                  # bias (once)
    )

    return pl.pallas_call(
        _proj_kernel,
        out_shape=jax.ShapeDtypeStruct((B, _NUM_CLASSES), jnp.float32),
        grid=grid,
        in_specs=[
            pl.BlockSpec((TB, H), lambda i: (i, 0)),     # left activations
            pl.BlockSpec((TB, H), lambda i: (i, 0)),     # right activations
            pl.BlockSpec((H, _LANES), lambda i: (0, 0),  # resident weight L
                         pipeline_mode=pl.Buffered(1)),
            pl.BlockSpec((H, _LANES), lambda i: (0, 0),  # resident weight R
                         pipeline_mode=pl.Buffered(1)),
            pl.BlockSpec((1, _LANES), lambda i: (0, 0),  # resident bias
                         pipeline_mode=pl.Buffered(1)),
        ],
        out_specs=pl.BlockSpec((TB, _NUM_CLASSES), lambda i: (i, 0)),
        compiler_params=pltpu.CompilerParams(
            dimension_semantics=("parallel",),
            vmem_limit_bytes=vmem_limit,
        ),
        cost_estimate=cost,
    )(left, right, wl_pad, wr_pad, b_pad)


if __name__ == "__main__":
    key = jax.random.PRNGKey(0)
    k_left, k_right, k_w, k_b = jax.random.split(key, 4)

    batch = 8
    hidden_size = 32  # BERT hidden size (small synthetic value)

    # Synthetic pooler outputs (stand-ins for model(...)['pooler_output']),
    # kept in bf16 to avoid doubling HBM traffic.
    left = jax.random.normal(k_left, (batch, hidden_size)).astype(jnp.bfloat16)
    right = jax.random.normal(k_right, (batch, hidden_size)).astype(jnp.bfloat16)

    # Deterministic nn.Linear(2*hidden_size, 2) init (PyTorch-style uniform).
    fan_in = 2 * hidden_size
    bound = 1.0 / jnp.sqrt(fan_in)
    w = jax.random.uniform(k_w, (_NUM_CLASSES, fan_in), minval=-bound,
                           maxval=bound, dtype=jnp.float32)
    b = jax.random.uniform(k_b, (_NUM_CLASSES,), minval=-bound, maxval=bound,
                           dtype=jnp.float32)

    # One-time weight prepack (hoisted out of the per-call path).
    wl_pad, wr_pad, b_pad = prepack_proj_params(w, b, dtype=jnp.bfloat16)

    logits = paraphrase_logits(left, right, wl_pad, wr_pad, b_pad)
    logits = jax.block_until_ready(logits)

    # Pure-JAX reference using the same bf16-rounded operands, f32 math.
    lf = left.astype(jnp.float32)
    rf = right.astype(jnp.float32)
    wlf = wl_pad[:, :_NUM_CLASSES].astype(jnp.float32)
    wrf = wr_pad[:, :_NUM_CLASSES].astype(jnp.float32)
    ref = lf @ wlf + rf @ wrf + b.reshape(1, _NUM_CLASSES)

    assert logits.shape == (batch, _NUM_CLASSES)
    assert jnp.allclose(logits, ref, atol=1e-3, rtol=1e-3), "mismatch vs reference"

    print("KERNEL_OK")
</pallas_src>

<mosaic_0001>
module attributes {stable_mosaic.version = 11 : i64} {
  func.func @_proj_kernel(%arg0: i32, %arg1: memref<8x32xbf16, #tpu.memory_space<vmem>>, %arg2: memref<8x32xbf16, #tpu.memory_space<vmem>>, %arg3: memref<32x128xbf16, #tpu.memory_space<vmem>>, %arg4: memref<32x128xbf16, #tpu.memory_space<vmem>>, %arg5: memref<1x128xf32, #tpu.memory_space<vmem>>, %arg6: memref<8x2xf32, #tpu.memory_space<vmem>>) attributes {dimension_semantics = [#tpu.dimension_semantics<parallel>], iteration_bounds = array<i64: 1>, scalar_prefetch = 0 : i64, scratch_operands = 0 : i64, tpu.core_type = #tpu.core_type<tc>, window_params = [{transform_indices = @transform_0, window_bounds = array<i64: 8, 32>}, {transform_indices = @transform_1, window_bounds = array<i64: 8, 32>}, {pipeline_mode = #tpu.pipeline_mode<synchronous>, transform_indices = @transform_2, window_bounds = array<i64: 32, 128>}, {pipeline_mode = #tpu.pipeline_mode<synchronous>, transform_indices = @transform_3, window_bounds = array<i64: 32, 128>}, {pipeline_mode = #tpu.pipeline_mode<synchronous>, transform_indices = @transform_4, window_bounds = array<i64: 1, 128>}, {transform_indices = @transform_5, window_bounds = array<i64: 8, 2>}]} {
    %c0 = arith.constant 0 : index
    %c0_0 = arith.constant 0 : index
    %0 = vector.load %arg1[%c0, %c0_0] : memref<8x32xbf16, #tpu.memory_space<vmem>>, vector<8x32xbf16>
    %c0_1 = arith.constant 0 : index
    %c0_2 = arith.constant 0 : index
    %1 = vector.load %arg3[%c0_1, %c0_2] : memref<32x128xbf16, #tpu.memory_space<vmem>>, vector<32x128xbf16>
    %cst = arith.constant dense<0.000000e+00> : vector<8x128xf32>
    %2 = tpu.matmul %0, %1, %cst {dimension_numbers = #tpu.dot_dimension_numbers<[1], [0], [0], [1], [0, 0, 1, 1], [], []>} : vector<8x32xbf16>, vector<32x128xbf16>, vector<8x128xf32> -> vector<8x128xf32>
    %c0_3 = arith.constant 0 : index
    %c0_4 = arith.constant 0 : index
    %3 = vector.load %arg2[%c0_3, %c0_4] : memref<8x32xbf16, #tpu.memory_space<vmem>>, vector<8x32xbf16>
    %c0_5 = arith.constant 0 : index
    %c0_6 = arith.constant 0 : index
    %4 = vector.load %arg4[%c0_5, %c0_6] : memref<32x128xbf16, #tpu.memory_space<vmem>>, vector<32x128xbf16>
    %cst_7 = arith.constant dense<0.000000e+00> : vector<8x128xf32>
    %5 = tpu.matmul %3, %4, %cst_7 {dimension_numbers = #tpu.dot_dimension_numbers<[1], [0], [0], [1], [0, 0, 1, 1], [], []>} : vector<8x32xbf16>, vector<32x128xbf16>, vector<8x128xf32> -> vector<8x128xf32>
    %6 = arith.addf %2, %5 : vector<8x128xf32>
    %c0_8 = arith.constant 0 : index
    %c0_9 = arith.constant 0 : index
    %7 = vector.load %arg5[%c0_8, %c0_9] : memref<1x128xf32, #tpu.memory_space<vmem>>, vector<1x128xf32>
    %8 = vector.broadcast %7 : vector<1x128xf32> to vector<8x128xf32>
    %9 = arith.addf %6, %8 : vector<8x128xf32>
    %10 = vector.extract_strided_slice %9 {offsets = [0, 0], sizes = [8, 2], strides = [1, 1]} : vector<8x128xf32> to vector<8x2xf32>
    %c0_10 = arith.constant 0 : index
    %c0_11 = arith.constant 0 : index
    %11 = vector.load %arg6[%c0_10, %c0_11] : memref<8x2xf32, #tpu.memory_space<vmem>>, vector<8x2xf32>
    tpu.vector_store %arg6[%c0_10, %c0_11], %10 {strides = array<i32>} : memref<8x2xf32, #tpu.memory_space<vmem>>, vector<8x2xf32>,
    return
  }
  func.func @transform_0(%arg0: i32) -> (i32, i32) {
    %c0_i32 = arith.constant 0 : i32
    %c0_i32_0 = arith.constant 0 : i32
    return %arg0, %c0_i32 : i32, i32
  }
  func.func @transform_1(%arg0: i32) -> (i32, i32) {
    %c0_i32 = arith.constant 0 : i32
    %c0_i32_0 = arith.constant 0 : i32
    return %arg0, %c0_i32 : i32, i32
  }
  func.func @transform_2(%arg0: i32) -> (i32, i32) {
    %c0_i32 = arith.constant 0 : i32
    %c0_i32_0 = arith.constant 0 : i32
    %c0_i32_1 = arith.constant 0 : i32
    return %c0_i32, %c0_i32_0 : i32, i32
  }
  func.func @transform_3(%arg0: i32) -> (i32, i32) {
    %c0_i32 = arith.constant 0 : i32
    %c0_i32_0 = arith.constant 0 : i32
    %c0_i32_1 = arith.constant 0 : i32
    return %c0_i32, %c0_i32_0 : i32, i32
  }
  func.func @transform_4(%arg0: i32) -> (i32, i32) {
    %c0_i32 = arith.constant 0 : i32
    %c0_i32_0 = arith.constant 0 : i32
    %c0_i32_1 = arith.constant 0 : i32
    return %c0_i32, %c0_i32_0 : i32, i32
  }
  func.func @transform_5(%arg0: i32) -> (i32, i32) {
    %c0_i32 = arith.constant 0 : i32
    %c0_i32_0 = arith.constant 0 : i32
    return %arg0, %c0_i32 : i32, i32
  }
}

</mosaic_0001>

<llo_original>
// kernel: tpu_custom_call.1
$region0: #{tpu_custom_call.1}
  #allocation0 [shape = 'u32[]', space=smem, size = 0x4, offset = 0x4, fixed_abs, tag = 'smem constant byte address 0x4 - core index']
  #allocation1 [shape = 'u32[72,128]{1,0:T(1,128)}', space=vmem, size = 0x9000, scoped, tag = 'internal scratch']
  %s0 = inlined_call_operand.hbm [shape: bf16[8,32], index: 0, kind: input, shape index: {}]
  %s1 = inlined_call_operand.hbm [shape: bf16[8,32], index: 1, kind: input, shape index: {}]
  %s2 = inlined_call_operand.hbm [shape: bf16[32,128], index: 2, kind: input, shape index: {}]
  %s3 = inlined_call_operand.hbm [shape: bf16[32,128], index: 3, kind: input, shape index: {}]
  %s4 = inlined_call_operand.vmem [shape: f32[1,128], index: 4, kind: input, shape index: {}]
  %s5 = inlined_call_operand.vmem [shape: f32[8,2], index: 5, kind: output, shape index: {}]
  %s6 = sld [smem:[#allocation0]]
  $region46: #{tpu_custom_call.1} parent=0
    _
  %s8 = ssub.s32 1, %s6
  %s9 = scalar_select 0, %s8, %s6
  $region1: #{tpu_custom_call.1} parent=0
    #allocation2 [shape = 'u8[2048]{0}', space=vmem, size = 0x800, scoped, tag = 'input window, operand 0, single buffered']
    #allocation3 [shape = 's32[1]{0}', space=sflag, size = 0x4, scoped, tag = 'scoped memory for tpu_custom_call.1']
    #allocation4 [shape = 'u8[2048]{0}', space=vmem, size = 0x800, scoped, tag = 'input window, operand 1, single buffered']
    #allocation5 [shape = 's32[1]{0}', space=sflag, size = 0x4, scoped, tag = 'scoped memory for tpu_custom_call.1']
    #allocation6 [shape = 'u8[8192]{0}', space=vmem, size = 0x2000, scoped, tag = 'input window, operand 2, single buffered']
    #allocation7 [shape = 'u8[8192]{0}', space=vmem, size = 0x2000, scoped, tag = 'input window, operand 3, single buffered']
    #allocation8 [shape = 's32[1]{0}', space=sflag, size = 0x4, scoped, tag = 'scoped memory for tpu_custom_call.1']
    %10 = vsyncpa [#allocation3], 0
    %11 = vsyncpa [#allocation5], 0
    %12 = vsyncpa [#allocation8], 0
    // Predicated region
    $region2: #{tpu_custom_call.1} parent=1 // pred_check
      _
    $region3: #{tpu_custom_call.1} parent=1 // pred_check_branch
      %14 = sbr.rel (0) target = $region5
    $region4: #{tpu_custom_call.1} parent=1 // pred_region
      %16 = vsyncadd [#allocation3], 0
      %s18 = sshll.u32 %s0, 4
      %s19 = int_to_ptr.hbm [resolvable:$true] %s18
      %s20 = sshll.u32 [#allocation2], 4
      %s21 = int_to_ptr.vmem [resolvable:$true] %s20
      %23 = dma.hbm_to_vmem [thread:$0]  %s19, 64, %s21, [#allocation3]
    $region5: #{tpu_custom_call.1} parent=1 // pred_fallthru
      _
    // Predicated region
    $region6: #{tpu_custom_call.1} parent=1 // pred_check
      _
    $region7: #{tpu_custom_call.1} parent=1 // pred_check_branch
      %25 = sbr.rel (0) target = $region9
    $region8: #{tpu_custom_call.1} parent=1 // pred_region
      %27 = vsyncadd [#allocation5], 0
      %s29 = sshll.u32 %s1, 4
      %s30 = int_to_ptr.hbm [resolvable:$true] %s29
      %s31 = sshll.u32 [#allocation4], 4
      %s32 = int_to_ptr.vmem [resolvable:$true] %s31
      %34 = dma.hbm_to_vmem [thread:$0]  %s30, 64, %s32, [#allocation5]
    $region9: #{tpu_custom_call.1} parent=1 // pred_fallthru
      _
    // Predicated region
    $region10: #{tpu_custom_call.1} parent=1 // pred_check
      _
    $region11: #{tpu_custom_call.1} parent=1 // pred_check_branch
      %36 = sbr.rel (0) target = $region13
    $region12: #{tpu_custom_call.1} parent=1 // pred_region
      %38 = vsyncadd [#allocation5], 0
      %s39 = sshll.u32 %s2, 4
      %s40 = int_to_ptr.hbm [resolvable:$true] %s39
      %s41 = sshll.u32 [#allocation6], 4
      %s42 = int_to_ptr.vmem [resolvable:$true] %s41
      %47 = dma.hbm_to_vmem [thread:$0]  %s40, 256, %s42, [#allocation5], 64, 64, 4
    $region13: #{tpu_custom_call.1} parent=1 // pred_fallthru
      _
    // Predicated region
    $region14: #{tpu_custom_call.1} parent=1 // pred_check
      _
    $region15: #{tpu_custom_call.1} parent=1 // pred_check_branch
      %49 = sbr.rel (0) target = $region17
    $region16: #{tpu_custom_call.1} parent=1 // pred_region
      %51 = vsyncadd [#allocation8], 0
      %s52 = sshll.u32 %s3, 4
      %s53 = int_to_ptr.hbm [resolvable:$true] %s52
      %s54 = sshll.u32 [#allocation7], 4
      %s55 = int_to_ptr.vmem [resolvable:$true] %s54
      %60 = dma.hbm_to_vmem [thread:$0]  %s53, 256, %s55, [#allocation8], 64, 64, 4
    $region17: #{tpu_custom_call.1} parent=1 // pred_fallthru
      _
    // Predicated region
    $region18: #{tpu_custom_call.1} parent=1 // pred_check
      _
    $region19: #{tpu_custom_call.1} parent=1 // pred_check_branch
      %62 = sbr.rel (0) target = $region21
    $region20: #{tpu_custom_call.1} parent=1 // pred_region
      _
    $region21: #{tpu_custom_call.1} parent=1 // pred_fallthru
      _
    // Predicated region
    $region22: #{tpu_custom_call.1} parent=1 // pred_check
      _
    $region23: #{tpu_custom_call.1} parent=1 // pred_check_branch
      %64 = sbr.rel (0) target = $region25
    $region24: #{tpu_custom_call.1} parent=1 // pred_region
      %66 = dma.done [#allocation3], 64
    $region25: #{tpu_custom_call.1} parent=1 // pred_fallthru
      _
    // Predicated region
    $region26: #{tpu_custom_call.1} parent=1 // pred_check
      _
    $region27: #{tpu_custom_call.1} parent=1 // pred_check_branch
      %68 = sbr.rel (0) target = $region29
    $region28: #{tpu_custom_call.1} parent=1 // pred_region
      %70 = dma.done [#allocation5], 64
    $region29: #{tpu_custom_call.1} parent=1 // pred_fallthru
      _
    // Predicated region
    $region30: #{tpu_custom_call.1} parent=1 // pred_check
      _
    $region31: #{tpu_custom_call.1} parent=1 // pred_check_branch
      %72 = sbr.rel (0) target = $region33
    $region32: #{tpu_custom_call.1} parent=1 // pred_region
      %74 = dma.done [#allocation5], 256
    $region33: #{tpu_custom_call.1} parent=1 // pred_fallthru
      _
    // Predicated region
    $region34: #{tpu_custom_call.1} parent=1 // pred_check
      _
    $region35: #{tpu_custom_call.1} parent=1 // pred_check_branch
      %76 = sbr.rel (0) target = $region37
    $region36: #{tpu_custom_call.1} parent=1 // pred_region
      %78 = dma.done [#allocation8], 256
    $region37: #{tpu_custom_call.1} parent=1 // pred_fallthru
      _
    %v80 = vld [vmem:[#allocation2] sm:$0xf]
    %v81 = vld [vmem:[#allocation6] sm:$0xf]
    %v82 = vld [vmem:[#allocation6 + $0x4] sm:$0xf]
    %v83 = vld [vmem:[#allocation6 + $0x8] sm:$0xf]
    %v84 = vld [vmem:[#allocation6 + $0xc] sm:$0xf]
    %v85 = vld [vmem:[#allocation4] sm:$0xf]
    %v86 = vld [vmem:[#allocation7] sm:$0xf]
    %v87 = vld [vmem:[#allocation7 + $0x4] sm:$0xf]
    %v88 = vld [vmem:[#allocation7 + $0x8] sm:$0xf]
    %v89 = vld [vmem:[#allocation7 + $0xc] sm:$0xf]
    %v94 = vunpack.c.l.b16 %v86
    %v95 = vunpack.c.l.b16 %v87
    %v96 = vunpack.c.l.b16 %v88
    %v97 = vunpack.c.l.b16 %v89
    %v98 = vpack.c.b16 %v95, %v94
    %v99 = vpack.c.b16 %v97, %v96
    %vm102 = vcmask 261120
    %v104 = vsel %vm102, %v85, 0
    %106 = vmatpush.bf16.msra.mxu0 0
    %107 = vmatpush.bf16.msra.mxu0 0
    %108 = vmatpush.bf16.msra.mxu0 0
    %109 = vmatpush.bf16.msra.mxu0 0
    %110 = vmatpush.bf16.msra.mxu0 0
    %111 = vmatpush.bf16.msra.mxu0 0
    %112 = vmatpush.bf16.msra.mxu0 %v99
    %113 = vmatpush.bf16.msra.mxu0 %v98
    %114 = vmatmul.bf16.gmra.mxu0 %v104
    %v115 = vpop.f32.mrf.mxu0
    %v116 = vadd.f32 0.0, %v115
    %v117 = vpop.f32.mrf.mxu0
    %118 = vdwg.mxu0
    %v123 = vunpack.c.l.b16 %v81
    %v124 = vunpack.c.l.b16 %v82
    %v125 = vunpack.c.l.b16 %v83
    %v126 = vunpack.c.l.b16 %v84
    %v127 = vpack.c.b16 %v124, %v123
    %v128 = vpack.c.b16 %v126, %v125
    %v132 = vsel %vm102, %v80, 0
    %134 = vmatpush.bf16.msra.mxu0 0
    %135 = vmatpush.bf16.msra.mxu0 0
    %136 = vmatpush.bf16.msra.mxu0 0
    %137 = vmatpush.bf16.msra.mxu0 0
    %138 = vmatpush.bf16.msra.mxu0 0
    %139 = vmatpush.bf16.msra.mxu0 0
    %140 = vmatpush.bf16.msra.mxu0 %v128
    %141 = vmatpush.bf16.msra.mxu0 %v127
    %142 = vmatmul.bf16.gmra.mxu0 %v132
    %v143 = vpop.f32.mrf.mxu0
    %v144 = vadd.f32 %v116, %v143
    %v145 = vpop.f32.mrf.mxu0
    %146 = vdwg.mxu0
    %v147 = vld [vmem:[%s4] sm:$0x1]
    %v149 = vperm.slane %v147, 0
    %v151 = vadd.f32 %v144, %v149
    %vm152 = vcmask 15360
    %153 = vst.msk [vmem:[%s5] sm:$0xff] %vm152, %v151
    // Predicated region
    $region38: #{tpu_custom_call.1} parent=1 // pred_check
      _
    $region39: #{tpu_custom_call.1} parent=1 // pred_check_branch
      %155 = sbr.rel (0) target = $region41
    $region40: #{tpu_custom_call.1} parent=1 // pred_region
      _
    $region41: #{tpu_custom_call.1} parent=1 // pred_fallthru
      _
    // Predicated region
    $region42: #{tpu_custom_call.1} parent=1 // pred_check
      _
    $region43: #{tpu_custom_call.1} parent=1 // pred_check_branch
      %157 = sbr.rel (0) target = $region45
    $region44: #{tpu_custom_call.1} parent=1 // pred_region
      _
    $region45: #{tpu_custom_call.1} parent=1 // pred_fallthru
      _
    %158 = vsyncpa [#allocation3], 1
    %159 = vsyncpa [#allocation5], 1
    %160 = vsyncpa [#allocation8], 1

</llo_original>
